<compile_context>
chip_gen: v6e
topology: v6e:2x2x1
jax: 0.10.0
libtpu: 0.0.40
codegen_flags: <defaults>
</compile_context>

<pallas_src>
import functools

import jax
import jax.numpy as jnp
from jax import lax
from jax.experimental import pallas as pl
from jax.experimental.pallas import tpu as pltpu

EPS = 1e-5          # torch.nn.BatchNorm1d default
LANE = 128
SUBLANE = 8


def _round_up(value, multiple):
    return (value + multiple - 1) // multiple * multiple


def _fc1_stats_kernel(x_ref, s1_ref, t1_ref, w1_ref, h_ref, st_ref, *,
                      tile_rows, n_valid, mm_dtype):
    """Pass 1: h = relu(x*scale1 + shift1) @ w1^T per batch tile, plus
    per-tile BN2 partial statistics (sum / sum-of-squares over the tile)."""
    x1 = jnp.maximum(x_ref[...] * s1_ref[...] + t1_ref[...], 0.0)
    h = jnp.dot(x1.astype(mm_dtype), w1_ref[...],
                preferred_element_type=jnp.float32)
    if n_valid is not None:
        # Zero batch-padding rows so they do not pollute the BN2 statistics.
        row = (pl.program_id(0) * tile_rows
               + lax.broadcasted_iota(jnp.int32, h.shape, 0))
        h = jnp.where(row < n_valid, h, 0.0)
    h_ref[...] = h.astype(h_ref.dtype)
    st_ref[...] = jnp.concatenate(
        [jnp.sum(h, axis=0, keepdims=True),
         jnp.sum(h * h, axis=0, keepdims=True)], axis=0)


def _bn2_fc2_kernel(h_ref, s2_ref, t2_ref, w2_ref, o_ref, *, mm_dtype):
    """Pass 2: out = relu(h*scale2 + shift2) @ w2^T per batch tile."""
    h = h_ref[...].astype(jnp.float32)
    x2 = jnp.maximum(h * s2_ref[...] + t2_ref[...], 0.0)
    o_ref[...] = jnp.dot(x2.astype(mm_dtype), w2_ref[...],
                         preferred_element_type=jnp.float32).astype(o_ref.dtype)


def linear_path_preact(x, gamma1, beta1, gamma2, beta2, w1, w2, *,
                       block_rows=512, matmul_dtype=jnp.bfloat16,
                       intermediate_dtype=jnp.bfloat16):
    """Forward pass of LinearPathPreact (training-mode BatchNorm semantics).

    x:  (N, C_in) activations.
    w1: (H, C_in)  fc1.weight (PyTorch (out, in) layout), bias-free.
    w2: (H, H)     fc2.weight.
    gamma*/beta*:  BatchNorm1d affine parameters.

    block_rows:         batch-tile size. 512 keeps the double-buffered pipeline
                        well under v7x's 64 MiB VMEM; sweep up to 2048-8192 on
                        v5e/v6e.
    matmul_dtype:       MXU operand dtype (bf16 = peak MXU throughput, f32
                        accumulation). Pass jnp.float32 for full-f32 matmuls.
    intermediate_dtype: storage dtype of the h intermediate between the two
                        passes (bf16 halves its HBM traffic; BN2 statistics
                        are always accumulated from the f32 MXU result).
    """
    n, c_in = x.shape
    hidden = w1.shape[0]
    assert w1.shape == (hidden, c_in) and w2.shape == (hidden, hidden)

    xf = x.astype(jnp.float32)
    mm_bytes = jnp.dtype(matmul_dtype).itemsize
    h_bytes = jnp.dtype(intermediate_dtype).itemsize
    f32b = 4

    # ---- Lane-dense padding of the hidden axis only (multiple of 128). ------
    # C_in stays unpadded: a full-extent block dim satisfies the (8,128) rule,
    # and not padding avoids inflating / copying x in HBM.
    h_pad = _round_up(hidden, LANE)

    # ---- Batch tiling (multiple of 8 sublanes). -----------------------------
    tm = min(_round_up(block_rows, SUBLANE), _round_up(n, SUBLANE))
    n_pad = _round_up(n, tm)
    num_tiles = n_pad // tm
    n_valid = None if n_pad == n else n

    # ---- BN1 folded into per-channel scale/shift (global batch stats). ------
    mean1 = jnp.mean(xf, axis=0, keepdims=True)
    var1 = jnp.mean(jnp.square(xf - mean1), axis=0, keepdims=True)   # biased
    scale1 = gamma1.reshape(1, c_in).astype(jnp.float32) * lax.rsqrt(var1 + EPS)
    shift1 = beta1.reshape(1, c_in).astype(jnp.float32) - mean1 * scale1

    # ---- Pad & lay out operands (zero padding is exact for all the math). ---
    # NOTE: in a real graph network, prepare the padded/transposed/bf16 weights
    # once outside the hot path instead of per call.
    x_p = xf if n_pad == n else jnp.pad(xf, ((0, n_pad - n), (0, 0)))
    w1t = jnp.pad(jnp.transpose(w1).astype(jnp.float32),
                  ((0, 0), (0, h_pad - hidden))).astype(matmul_dtype)
    w2t = jnp.pad(jnp.transpose(w2).astype(jnp.float32),
                  ((0, h_pad - hidden), (0, h_pad - hidden))).astype(matmul_dtype)
    g2_p = jnp.pad(gamma2.reshape(1, hidden).astype(jnp.float32),
                   ((0, 0), (0, h_pad - hidden)))
    b2_p = jnp.pad(beta2.reshape(1, hidden).astype(jnp.float32),
                   ((0, 0), (0, h_pad - hidden)))

    row_spec = pl.BlockSpec((tm, c_in), lambda i: (i, 0))       # x tiles
    hid_spec = pl.BlockSpec((tm, h_pad), lambda i: (i, 0))      # h / out tiles
    const2 = lambda shape: pl.BlockSpec(shape, lambda i: (0, 0))  # resident
    stat_spec = pl.BlockSpec((None, 2, h_pad), lambda i: (i, 0, 0))

    # Explicit VMEM budget: double-buffered activation tiles + resident
    # weights/params, 2x headroom, capped well under v7x's 64 MiB physical.
    vmem_est = 2 * (2 * tm * c_in * f32b                  # x tiles (dbl-buf)
                    + 2 * tm * h_pad * (h_bytes + f32b)   # h in/out tiles
                    + 2 * tm * h_pad * f32b               # f32 compute copies
                    + 2 * 2 * h_pad * f32b                # per-tile stats
                    + (c_in + h_pad) * h_pad * mm_bytes   # weights
                    + 8 * (c_in + h_pad) * f32b)          # BN scale/shift rows
    vmem_limit = int(min(max(vmem_est, 4 << 20), 48 << 20))
    cparams = pltpu.CompilerParams(
        dimension_semantics=("parallel",),                # megacore-shard batch
        vmem_limit_bytes=vmem_limit)

    # ---- Pass 1: fc1(relu(bn1 x)) + per-tile BN2 partial statistics. --------
    cost1 = pl.CostEstimate(
        flops=int(2 * n_pad * c_in * h_pad + 6 * n_pad * (c_in + h_pad)),
        transcendentals=0,
        bytes_accessed=int(f32b * n_pad * c_in
                           + h_bytes * n_pad * h_pad
                           + f32b * num_tiles * 2 * h_pad
                           + c_in * h_pad * mm_bytes))
    h_full, stats = pl.pallas_call(
        functools.partial(_fc1_stats_kernel, tile_rows=tm, n_valid=n_valid,
                          mm_dtype=matmul_dtype),
        grid=(num_tiles,),
        in_specs=[row_spec,                    # x tile
                  const2((1, c_in)),           # scale1 (VMEM-resident)
                  const2((1, c_in)),           # shift1
                  const2((c_in, h_pad))],      # w1^T
        out_specs=(hid_spec,                   # h tile
                   stat_spec),                 # per-tile (sum, sumsq)
        out_shape=(jax.ShapeDtypeStruct((n_pad, h_pad), intermediate_dtype),
                   jax.ShapeDtypeStruct((num_tiles, 2, h_pad), jnp.float32)),
        compiler_params=cparams,
        cost_estimate=cost1,
    )(x_p, scale1, shift1, w1t)

    # ---- Finalize BN2 (global batch stats) into scale/shift: tiny XLA math. -
    tot = jnp.sum(stats, axis=0)                                # (2, h_pad)
    mean2 = tot[0:1, :] / n
    var2 = jnp.maximum(tot[1:2, :] / n - mean2 * mean2, 0.0)    # biased variance
    scale2 = g2_p * lax.rsqrt(var2 + EPS)
    shift2 = b2_p - mean2 * scale2

    # ---- Pass 2: fc2(relu(bn2 h)). ------------------------------------------
    cost2 = pl.CostEstimate(
        flops=int(2 * n_pad * h_pad * h_pad + 3 * n_pad * h_pad),
        transcendentals=0,
        bytes_accessed=int((h_bytes + f32b) * n_pad * h_pad
                           + h_pad * h_pad * mm_bytes))
    out_p = pl.pallas_call(
        functools.partial(_bn2_fc2_kernel, mm_dtype=matmul_dtype),
        grid=(num_tiles,),
        in_specs=[hid_spec,                    # h tile
                  const2((1, h_pad)),          # scale2
                  const2((1, h_pad)),          # shift2
                  const2((h_pad, h_pad))],     # w2^T
        out_specs=hid_spec,
        out_shape=jax.ShapeDtypeStruct((n_pad, h_pad), jnp.float32),
        compiler_params=cparams,
        cost_estimate=cost2,
    )(h_full, scale2, shift2, w2t)

    # TODO(synk): emit bf16 output directly if the downstream consumer allows it.
    return out_p[:n, :hidden]


if __name__ == "__main__":
    key = jax.random.PRNGKey(0)
    k_x, k_w1, k_w2, k_g1, k_b1, k_g2, k_b2 = jax.random.split(key, 7)

    N, C_IN, HIDDEN = 8, 16, 32

    x = jax.random.normal(k_x, (N, C_IN), dtype=jnp.float32)
    # Deterministic synthetic parameters (module __init__ shapes).
    w1 = jax.random.normal(k_w1, (HIDDEN, C_IN), dtype=jnp.float32) * 0.1    # fc1.weight
    w2 = jax.random.normal(k_w2, (HIDDEN, HIDDEN), dtype=jnp.float32) * 0.1  # fc2.weight
    gamma1 = 1.0 + 0.1 * jax.random.normal(k_g1, (C_IN,), dtype=jnp.float32)
    beta1 = 0.1 * jax.random.normal(k_b1, (C_IN,), dtype=jnp.float32)
    gamma2 = 1.0 + 0.1 * jax.random.normal(k_g2, (HIDDEN,), dtype=jnp.float32)
    beta2 = 0.1 * jax.random.normal(k_b2, (HIDDEN,), dtype=jnp.float32)

    out = linear_path_preact(x, gamma1, beta1, gamma2, beta2, w1, w2)
    out = jax.block_until_ready(out)
    assert out.shape == (N, HIDDEN)

    # Reference #1: exact PyTorch training-mode semantics in pure f32.
    def ref_f32(x):
        m1 = x.mean(0, keepdims=True)
        v1 = ((x - m1) ** 2).mean(0, keepdims=True)
        x1 = jnp.maximum((x - m1) / jnp.sqrt(v1 + EPS) * gamma1 + beta1, 0.0)
        h = x1 @ w1.T
        m2 = h.mean(0, keepdims=True)
        v2 = ((h - m2) ** 2).mean(0, keepdims=True)
        x2 = jnp.maximum((h - m2) / jnp.sqrt(v2 + EPS) * gamma2 + beta2, 0.0)
        return x2 @ w2.T

    # Reference #2: same math with the kernel's precision policy (folded BN
    # scale/shift, bf16 MXU operands, f32 accumulation, bf16-stored h) for a
    # tight check.
    def ref_matched(x):
        m1 = x.mean(0, keepdims=True)
        v1 = ((x - m1) ** 2).mean(0, keepdims=True)
        s1 = gamma1 * lax.rsqrt(v1 + EPS)
        t1 = beta1 - m1 * s1
        x1 = jnp.maximum(x * s1 + t1, 0.0)
        h = jnp.dot(x1.astype(jnp.bfloat16), w1.T.astype(jnp.bfloat16),
                    preferred_element_type=jnp.float32)
        m2 = jnp.sum(h, 0, keepdims=True) / N
        v2 = jnp.maximum(jnp.sum(h * h, 0, keepdims=True) / N - m2 * m2, 0.0)
        s2 = gamma2 * lax.rsqrt(v2 + EPS)
        t2 = beta2 - m2 * s2
        h_q = h.astype(jnp.bfloat16).astype(jnp.float32)   # h stored as bf16
        x2 = jnp.maximum(h_q * s2 + t2, 0.0)
        return jnp.dot(x2.astype(jnp.bfloat16), w2.T.astype(jnp.bfloat16),
                       preferred_element_type=jnp.float32)

    matched = ref_matched(x)
    exact = ref_f32(x)
    assert jnp.allclose(out, matched, atol=2e-3, rtol=2e-3), \
        float(jnp.max(jnp.abs(out - matched)))
    assert jnp.allclose(out, exact, atol=5e-2, rtol=5e-2), \
        float(jnp.max(jnp.abs(out - exact)))

    print("KERNEL_OK")
</pallas_src>

<mosaic_0001>
module attributes {stable_mosaic.version = 11 : i64} {
  func.func @_fc1_stats_kernel(%arg0: i32, %arg1: memref<8x16xf32, #tpu.memory_space<vmem>>, %arg2: memref<1x16xf32, #tpu.memory_space<vmem>>, %arg3: memref<1x16xf32, #tpu.memory_space<vmem>>, %arg4: memref<16x128xbf16, #tpu.memory_space<vmem>>, %arg5: memref<8x128xbf16, #tpu.memory_space<vmem>>, %arg6: memref<1x2x128xf32, #tpu.memory_space<vmem>>) attributes {dimension_semantics = [#tpu.dimension_semantics<parallel>], iteration_bounds = array<i64: 1>, scalar_prefetch = 0 : i64, scratch_operands = 0 : i64, tpu.core_type = #tpu.core_type<tc>, window_params = [{transform_indices = @transform_0, window_bounds = array<i64: 8, 16>}, {pipeline_mode = #tpu.pipeline_mode<synchronous>, transform_indices = @transform_1, window_bounds = array<i64: 1, 16>}, {pipeline_mode = #tpu.pipeline_mode<synchronous>, transform_indices = @transform_2, window_bounds = array<i64: 1, 16>}, {pipeline_mode = #tpu.pipeline_mode<synchronous>, transform_indices = @transform_3, window_bounds = array<i64: 16, 128>}, {transform_indices = @transform_4, window_bounds = array<i64: 8, 128>}, {transform_indices = @transform_5, window_bounds = array<i64: 1, 2, 128>}]} {
    %c0 = arith.constant 0 : index
    %c0_0 = arith.constant 0 : index
    %0 = vector.load %arg1[%c0, %c0_0] : memref<8x16xf32, #tpu.memory_space<vmem>>, vector<8x16xf32>
    %c0_1 = arith.constant 0 : index
    %c0_2 = arith.constant 0 : index
    %1 = vector.load %arg2[%c0_1, %c0_2] : memref<1x16xf32, #tpu.memory_space<vmem>>, vector<1x16xf32>
    %2 = vector.broadcast %1 : vector<1x16xf32> to vector<8x16xf32>
    %3 = arith.mulf %0, %2 : vector<8x16xf32>
    %c0_3 = arith.constant 0 : index
    %c0_4 = arith.constant 0 : index
    %4 = vector.load %arg3[%c0_3, %c0_4] : memref<1x16xf32, #tpu.memory_space<vmem>>, vector<1x16xf32>
    %5 = vector.broadcast %4 : vector<1x16xf32> to vector<8x16xf32>
    %6 = arith.addf %3, %5 : vector<8x16xf32>
    %cst = arith.constant 0.000000e+00 : f32
    %7 = vector.broadcast %cst : f32 to vector<8x16xf32>
    %8 = arith.maximumf %6, %7 : vector<8x16xf32>
    %9 = arith.truncf %8 : vector<8x16xf32> to vector<8x16xbf16>
    %c0_5 = arith.constant 0 : index
    %c0_6 = arith.constant 0 : index
    %10 = vector.load %arg4[%c0_5, %c0_6] : memref<16x128xbf16, #tpu.memory_space<vmem>>, vector<16x128xbf16>
    %cst_7 = arith.constant dense<0.000000e+00> : vector<8x128xf32>
    %11 = tpu.matmul %9, %10, %cst_7 {dimension_numbers = #tpu.dot_dimension_numbers<[1], [0], [0], [1], [0, 0, 1, 1], [], []>} : vector<8x16xbf16>, vector<16x128xbf16>, vector<8x128xf32> -> vector<8x128xf32>
    %12 = arith.truncf %11 : vector<8x128xf32> to vector<8x128xbf16>
    %c0_8 = arith.constant 0 : index
    %c0_9 = arith.constant 0 : index
    %13 = vector.load %arg5[%c0_8, %c0_9] : memref<8x128xbf16, #tpu.memory_space<vmem>>, vector<8x128xbf16>
    tpu.vector_store %arg5[%c0_8, %c0_9], %12 {strides = array<i32>} : memref<8x128xbf16, #tpu.memory_space<vmem>>, vector<8x128xbf16>,
    %cst_10 = arith.constant dense<0.000000e+00> : vector<128xf32>
    %14 = vector.multi_reduction <add>, %11, %cst_10 [0] : vector<8x128xf32> to vector<128xf32>
    %15 = vector.shape_cast %14 : vector<128xf32> to vector<1x128xf32>
    %16 = arith.mulf %11, %11 : vector<8x128xf32>
    %cst_11 = arith.constant dense<0.000000e+00> : vector<128xf32>
    %17 = vector.multi_reduction <add>, %16, %cst_11 [0] : vector<8x128xf32> to vector<128xf32>
    %18 = vector.shape_cast %17 : vector<128xf32> to vector<1x128xf32>
    %19 = tpu.concatenate %15, %18 in 0 : vector<1x128xf32>, vector<1x128xf32> -> vector<2x128xf32>
    %c0_12 = arith.constant 0 : index
    %c0_13 = arith.constant 0 : index
    %c0_14 = arith.constant 0 : index
    %20 = vector.load %arg6[%c0_12, %c0_13, %c0_14] : memref<1x2x128xf32, #tpu.memory_space<vmem>>, vector<1x2x128xf32>
    %21 = vector.shape_cast %20 : vector<1x2x128xf32> to vector<2x128xf32>
    %22 = vector.shape_cast %19 : vector<2x128xf32> to vector<1x2x128xf32>
    tpu.vector_store %arg6[%c0_12, %c0_13, %c0_14], %22 {strides = array<i32>} : memref<1x2x128xf32, #tpu.memory_space<vmem>>, vector<1x2x128xf32>,
    return
  }
  func.func @transform_0(%arg0: i32) -> (i32, i32) {
    %c0_i32 = arith.constant 0 : i32
    %c0_i32_0 = arith.constant 0 : i32
    return %arg0, %c0_i32 : i32, i32
  }
  func.func @transform_1(%arg0: i32) -> (i32, i32) {
    %c0_i32 = arith.constant 0 : i32
    %c0_i32_0 = arith.constant 0 : i32
    %c0_i32_1 = arith.constant 0 : i32
    return %c0_i32, %c0_i32_0 : i32, i32
  }
  func.func @transform_2(%arg0: i32) -> (i32, i32) {
    %c0_i32 = arith.constant 0 : i32
    %c0_i32_0 = arith.constant 0 : i32
    %c0_i32_1 = arith.constant 0 : i32
    return %c0_i32, %c0_i32_0 : i32, i32
  }
  func.func @transform_3(%arg0: i32) -> (i32, i32) {
    %c0_i32 = arith.constant 0 : i32
    %c0_i32_0 = arith.constant 0 : i32
    %c0_i32_1 = arith.constant 0 : i32
    return %c0_i32, %c0_i32_0 : i32, i32
  }
  func.func @transform_4(%arg0: i32) -> (i32, i32) {
    %c0_i32 = arith.constant 0 : i32
    %c0_i32_0 = arith.constant 0 : i32
    return %arg0, %c0_i32 : i32, i32
  }
  func.func @transform_5(%arg0: i32) -> (i32, i32, i32) {
    %c0_i32 = arith.constant 0 : i32
    %c0_i32_0 = arith.constant 0 : i32
    %c0_i32_1 = arith.constant 0 : i32
    return %arg0, %c0_i32, %c0_i32_0 : i32, i32, i32
  }
}

</mosaic_0001>

<llo_original>
// kernel: tpu_custom_call.1
$region0: #{tpu_custom_call.1}
  #allocation0 [shape = 'u32[]', space=smem, size = 0x4, offset = 0x4, fixed_abs, tag = 'smem constant byte address 0x4 - core index']
  #allocation1 [shape = 'u32[144,128]{1,0:T(1,128)}', space=vmem, size = 0x12000, scoped, tag = 'internal scratch']
  %s0 = inlined_call_operand.hbm [shape: f32[8,16], index: 0, kind: input, shape index: {}]
  %s1 = inlined_call_operand.vmem [shape: f32[1,16], index: 1, kind: input, shape index: {}]
  %s2 = inlined_call_operand.vmem [shape: f32[1,16], index: 2, kind: input, shape index: {}]
  %s3 = inlined_call_operand.hbm [shape: bf16[16,128], index: 3, kind: input, shape index: {}]
  %s4 = inlined_call_operand.hbm [shape: bf16[8,128], index: 4, kind: output, shape index: {0}]
  %s5 = inlined_call_operand.hbm [shape: f32[1,2,128], index: 5, kind: output, shape index: {1}]
  %6 = xla_tuple %s4, %s5
  %s7 = sld [smem:[#allocation0]]
  $region42: #{tpu_custom_call.1} parent=0
    _
  %s9 = ssub.s32 1, %s7
  %s10 = scalar_select 0, %s9, %s7
  $region1: #{tpu_custom_call.1} parent=0
    #allocation2 [shape = 'u8[4096]{0}', space=vmem, size = 0x1000, scoped, tag = 'input window, operand 0, single buffered']
    #allocation3 [shape = 's32[1]{0}', space=sflag, size = 0x4, scoped, tag = 'scoped memory for tpu_custom_call.1']
    #allocation4 [shape = 's32[1]{0}', space=sflag, size = 0x4, scoped, tag = 'scoped memory for tpu_custom_call.1']
    #allocation5 [shape = 'u8[4096]{0}', space=vmem, size = 0x1000, scoped, tag = 'input window, operand 3, single buffered']
    #allocation6 [shape = 's32[1]{0}', space=sflag, size = 0x4, scoped, tag = 'scoped memory for tpu_custom_call.1']
    #allocation7 [shape = 'u8[2048]{0}', space=vmem, size = 0x800, scoped, tag = 'output window, operand 0, single buffered']
    #allocation8 [shape = 'u8[1024]{0}', space=vmem, size = 0x400, scoped, tag = 'output window, operand 1, single buffered']
    #allocation9 [shape = 's32[1]{0}', space=sflag, size = 0x4, scoped, tag = 'scoped memory for tpu_custom_call.1']
    %11 = vsyncpa [#allocation3], 0
    %12 = vsyncpa [#allocation6], 0
    %13 = vsyncpa [#allocation4], 0
    %14 = vsyncpa [#allocation9], 0
    // Predicated region
    $region2: #{tpu_custom_call.1} parent=1 // pred_check
      _
    $region3: #{tpu_custom_call.1} parent=1 // pred_check_branch
      %16 = sbr.rel (0) target = $region5
    $region4: #{tpu_custom_call.1} parent=1 // pred_region
      %s18 = ssub.s32 128, 128
      %19 = vsyncadd [#allocation3], %s18
      %s21 = sshll.u32 [#allocation2], 4
      %s22 = int_to_ptr.vmem [resolvable:$true] %s21
      %24 = dma.hbm_to_vmem [thread:$0]  %s0, 128, %s22, [#allocation3]
    $region5: #{tpu_custom_call.1} parent=1 // pred_fallthru
      _
    // Predicated region
    $region6: #{tpu_custom_call.1} parent=1 // pred_check
      _
    $region7: #{tpu_custom_call.1} parent=1 // pred_check_branch
      %26 = sbr.rel (0) target = $region9
    $region8: #{tpu_custom_call.1} parent=1 // pred_region
      _
    $region9: #{tpu_custom_call.1} parent=1 // pred_fallthru
      _
    // Predicated region
    $region10: #{tpu_custom_call.1} parent=1 // pred_check
      _
    $region11: #{tpu_custom_call.1} parent=1 // pred_check_branch
      %28 = sbr.rel (0) target = $region13
    $region12: #{tpu_custom_call.1} parent=1 // pred_region
      _
    $region13: #{tpu_custom_call.1} parent=1 // pred_fallthru
      _
    // Predicated region
    $region14: #{tpu_custom_call.1} parent=1 // pred_check
      _
    $region15: #{tpu_custom_call.1} parent=1 // pred_check_branch
      %30 = sbr.rel (0) target = $region17
    $region16: #{tpu_custom_call.1} parent=1 // pred_region
      %s32 = ssub.s32 128, 128
      %33 = vsyncadd [#allocation6], %s32
      %s34 = sshll.u32 [#allocation5], 4
      %s35 = int_to_ptr.vmem [resolvable:$true] %s34
      %40 = dma.hbm_to_vmem [thread:$0]  %s3, 128, %s35, [#allocation6], 64, 64, 4
    $region17: #{tpu_custom_call.1} parent=1 // pred_fallthru
      _
    // Predicated region
    $region18: #{tpu_custom_call.1} parent=1 // pred_check
      _
    $region19: #{tpu_custom_call.1} parent=1 // pred_check_branch
      %42 = sbr.rel (0) target = $region21
    $region20: #{tpu_custom_call.1} parent=1 // pred_region
      %43 = dma.done [#allocation3], 128
    $region21: #{tpu_custom_call.1} parent=1 // pred_fallthru
      _
    // Predicated region
    $region22: #{tpu_custom_call.1} parent=1 // pred_check
      _
    $region23: #{tpu_custom_call.1} parent=1 // pred_check_branch
      %45 = sbr.rel (0) target = $region25
    $region24: #{tpu_custom_call.1} parent=1 // pred_region
      %46 = dma.done [#allocation6], 128
    $region25: #{tpu_custom_call.1} parent=1 // pred_fallthru
      _
    %v48 = vld [vmem:[#allocation2] sm:$0xff]
    %v49 = vld [vmem:[%s1] sm:$0x1]
    %v51 = vlaneseq
    %v52 = vshrl.u32 %v51, 7
    %v53 = vsub.s32 0, %v52
    %v54 = vrot.slane %v49, %v53
    %v56 = vmul.f32 %v48, %v54
    %v57 = vld [vmem:[%s2] sm:$0x1]
    %v59 = vlaneseq
    %v60 = vshrl.u32 %v59, 7
    %v61 = vsub.s32 0, %v60
    %v62 = vrot.slane %v57, %v61
    %v64 = vadd.f32 %v56, %v62
    %v65 = vmax.f32 %v64, 0.0
    %v66 = vpack.c.bf16 %v65, %v65
    %v67 = vld [vmem:[#allocation5] sm:$0xf]
    %v68 = vld [vmem:[#allocation5 + $0x4] sm:$0xf]
    %v71 = vunpack.c.l.b16 %v67
    %v72 = vunpack.c.l.b16 %v68
    %v73 = vpack.c.b16 %v72, %v71
    %vm75 = vcmask 130048
    %v77 = vsel %vm75, %v66, 0
    %79 = vmatprep.subr.bf16.mxu0 0
    %80 = vmatpush1.bf16.msra.mxu0 0
    %81 = vmatprep.subr.bf16.mxu0 0
    %82 = vmatpush1.bf16.msra.mxu0 0
    %83 = vmatprep.subr.bf16.mxu0 0
    %84 = vmatpush1.bf16.msra.mxu0 0
    %85 = vmatprep.subr.bf16.mxu0 0
    %86 = vmatpush1.bf16.msra.mxu0 0
    %87 = vmatprep.subr.bf16.mxu0 0
    %88 = vmatpush1.bf16.msra.mxu0 0
    %89 = vmatprep.subr.bf16.mxu0 0
    %90 = vmatpush1.bf16.msra.mxu0 0
    %91 = vmatprep.subr.bf16.mxu0 0
    %92 = vmatpush1.bf16.msra.mxu0 0
    %93 = vmatprep.subr.bf16.mxu0 0
    %94 = vmatpush1.bf16.msra.mxu0 %v73
    %95 = vmatprep.subr.bf16.mxu0 0
    %96 = vmatpush2.bf16.msra.mxu0 0
    %97 = vmatprep.subr.bf16.mxu0 0
    %98 = vmatpush2.bf16.msra.mxu0 0
    %99 = vmatprep.subr.bf16.mxu0 0
    %100 = vmatpush2.bf16.msra.mxu0 0
    %101 = vmatprep.subr.bf16.mxu0 0
    %102 = vmatpush2.bf16.msra.mxu0 0
    %103 = vmatprep.subr.bf16.mxu0 0
    %104 = vmatpush2.bf16.msra.mxu0 0
    %105 = vmatprep.subr.bf16.mxu0 0
    %106 = vmatpush2.bf16.msra.mxu0 0
    %107 = vmatprep.subr.bf16.mxu0 0
    %108 = vmatpush2.bf16.msra.mxu0 0
    %109 = vmatprep.subr.bf16.mxu0 0
    %110 = vmatpush2.bf16.msra.mxu0 0
    %111 = vmatprep.mubr.bf16.mxu0 0
    %112 = vmatmul.mubr.bf16.gmra.mxu0 %v77
    %v113 = vpop.f32.mrf.mxu0
    %v114 = vadd.f32 0.0, %v113
    %v115 = vpop.f32.mrf.mxu0
    %v116 = vpop.f32.mrf.mxu0
    %v117 = vpop.f32.mrf.mxu0
    %118 = vdwg.mxu0
    %v119 = vpack.c.bf16 %v114, %v114
    %120 = vst [vmem:[#allocation7] sm:$0xf] %v119
    %v121 = vrot.slane %v114, 4
    %v122 = vadd.f32 %v114, %v121
    %v123 = vrot.slane %v122, 2
    %v124 = vadd.f32 %v122, %v123
    %v125 = vrot.slane %v124, 1
    %v126 = vadd.f32 %v124, %v125
    %v127 = vmul.f32 %v114, %v114
    %v128 = vrot.slane %v127, 4
    %v129 = vadd.f32 %v127, %v128
    %v130 = vrot.slane %v129, 2
    %v131 = vadd.f32 %v129, %v130
    %v132 = vrot.slane %v131, 1
    %v133 = vadd.f32 %v131, %v132
    %vm134 = vcmask 1040384
    %v135 = vsel %vm134, %v126, %v133
    %136 = vst [vmem:[#allocation8] sm:$0x3] %v135
    // Predicated region
    $region26: #{tpu_custom_call.1} parent=1 // pred_check
      _
    $region27: #{tpu_custom_call.1} parent=1 // pred_check_branch
      %138 = sbr.rel (0) target = $region29
    $region28: #{tpu_custom_call.1} parent=1 // pred_region
      %s140 = ssub.s32 64, 64
      %141 = vsyncadd [#allocation4], %s140
      %s143 = sshll.u32 [#allocation7], 4
      %s144 = int_to_ptr.vmem [resolvable:$true] %s143
      %146 = dma.vmem_to_hbm [thread:$0]  %s144, 64, %s4, [#allocation4]
    $region29: #{tpu_custom_call.1} parent=1 // pred_fallthru
      _
    // Predicated region
    $region30: #{tpu_custom_call.1} parent=1 // pred_check
      _
    $region31: #{tpu_custom_call.1} parent=1 // pred_check_branch
      %148 = sbr.rel (0) target = $region33
    $region32: #{tpu_custom_call.1} parent=1 // pred_region
      %s150 = ssub.s32 32, 32
      %151 = vsyncadd [#allocation9], %s150
      %s153 = sshll.u32 [#allocation8], 4
      %s154 = int_to_ptr.vmem [resolvable:$true] %s153
      %156 = dma.vmem_to_hbm [thread:$0]  %s154, 32, %s5, [#allocation9]
    $region33: #{tpu_custom_call.1} parent=1 // pred_fallthru
      _
    // Predicated region
    $region34: #{tpu_custom_call.1} parent=1 // pred_check
      _
    $region35: #{tpu_custom_call.1} parent=1 // pred_check_branch
      %158 = sbr.rel (0) target = $region37
    $region36: #{tpu_custom_call.1} parent=1 // pred_region
      %159 = dma.done [#allocation4], 64
    $region37: #{tpu_custom_call.1} parent=1 // pred_fallthru
      _
    // Predicated region
    $region38: #{tpu_custom_call.1} parent=1 // pred_check
      _
    $region39: #{tpu_custom_call.1} parent=1 // pred_check_branch
      %161 = sbr.rel (0) target = $region41
    $region40: #{tpu_custom_call.1} parent=1 // pred_region
      %162 = dma.done [#allocation9], 32
    $region41: #{tpu_custom_call.1} parent=1 // pred_fallthru
      _
    %163 = vsyncpa [#allocation3], 1
    %164 = vsyncpa [#allocation6], 1
    %165 = vsyncpa [#allocation4], 1
    %166 = vsyncpa [#allocation9], 1

</llo_original>
